<compile_context>
chip_gen: v6e
topology: v6e:2x2x1
jax: 0.10.0
libtpu: 0.0.40
codegen_flags: <defaults>
</compile_context>

<pallas_src>
import math

import jax
import jax.numpy as jnp
from jax import lax
from jax.experimental import pallas as pl
from jax.experimental.pallas import tpu as pltpu


def _compute_pe(params_ref, pe_scratch, tile_start):
    """Fill pe_scratch (TS, emb_dim) with the positional embedding of this seq tile.

    params_ref : (2, emb_dim) f32 -- row 0: inv_freq repeated 2x (inv_freq[j // 2]),
                                     row 1: phase (0 on even lanes, pi/2 on odd lanes).
    tile_start : f32 scalar, first absolute position of this seq tile.
    """
    ts, emb_dim = pe_scratch.shape
    inv = params_ref[0:1, :]                                   # (1, emb_dim)
    # Fold the tile offset into the phase row once (per-tile constant):
    #   theta = (tile_start + i) * inv + phase = i * inv + (tile_start * inv + phase)
    row = tile_start * inv + params_ref[1:2, :]                # (1, emb_dim)
    pos = lax.broadcasted_iota(jnp.int32, (ts, emb_dim), 0).astype(jnp.float32)
    # sin(theta + pi/2) == cos(theta)  ->  one transcendental per element, no select.
    pe_scratch[...] = jnp.sin(pos * inv + row)


def _pe_only_kernel(params_ref, out_ref, pe_scratch):
    """grid = (num_seq_tiles, bs); pure positional-embedding output (emb is None)."""
    ts = pe_scratch.shape[0]
    tile_start = (pl.program_id(0) * ts).astype(jnp.float32)   # outside pl.when!

    @pl.when(pl.program_id(1) == 0)   # batch axis innermost: compute pe once per tile
    def _():
        _compute_pe(params_ref, pe_scratch, tile_start)

    out_ref[...] = pe_scratch[...].astype(out_ref.dtype)


def _pe_add_kernel(params_ref, emb_ref, out_ref, pe_scratch):
    """grid = (num_seq_tiles, bs); out = pe + emb (emb cast to f32 in VMEM)."""
    ts = pe_scratch.shape[0]
    tile_start = (pl.program_id(0) * ts).astype(jnp.float32)   # outside pl.when!

    @pl.when(pl.program_id(1) == 0)
    def _():
        _compute_pe(params_ref, pe_scratch, tile_start)

    out_ref[...] = (pe_scratch[...] + emb_ref[...].astype(jnp.float32)).astype(out_ref.dtype)


def _vmem_budget():
    """(tile budget bytes, vmem_limit_bytes) tuned per device generation."""
    try:
        kind = jax.devices()[0].device_kind.lower()
    except Exception:  # pragma: no cover - defensive
        kind = ""
    if "v5" in kind or "v6" in kind:          # 128 MiB physical VMEM parts
        return 24 * 1024 * 1024, 64 * 1024 * 1024
    # v7x (64 MiB VMEM), CPU interpret, unknown: stay conservative.
    return 12 * 1024 * 1024, 32 * 1024 * 1024


def _choose_seq_tile(seq_len, emb_dim, emb_itemsize, budget):
    """Largest seq tile (multiple of 8, or full seq_len) fitting the VMEM budget.

    Per seq row we hold: out double-buffered f32 (8 B/elem) + pe scratch f32 (4 B/elem)
    and, only when emb is given, emb double-buffered in its native dtype.
    """
    per_row = emb_dim * (2 * 4 + 4 + (2 * emb_itemsize if emb_itemsize else 0))
    ts = max(8, budget // per_row)
    ts = (ts // 8) * 8
    ts = min(int(ts), int(seq_len)) if seq_len > 8 else int(seq_len)
    # Guarantee >= 2 seq tiles when possible so the "parallel" axis can feed both
    # TensorCores on v7x (and megacore on other parts).
    if ts >= seq_len and seq_len >= 16:
        ts = max(8, ((seq_len // 2 + 7) // 8) * 8)
    return int(ts)


def position_embedding(x, inv_freq, emb=None, *, out_dtype=jnp.float32, donate_emb=False):
    """JAX wrapper mirroring PositionEmbedding.forward.

    x          : [bs, seq_len]           (values unused, shape only — same as torch)
    inv_freq   : [1, emb_dim // 2]       float32 buffer
    emb        : optional [bs, seq_len, emb_dim] (any float dtype; DMA'd natively)
    out_dtype  : output dtype (float32 default == torch semantics; bf16 halves the
                 dominant HBM write traffic if the consumer accepts it)
    donate_emb : alias emb to the output (requires emb.dtype == out_dtype)
    returns    : [bs, seq_len, emb_dim]  out_dtype
    """
    bs, seq_len = x.shape
    half = inv_freq.shape[-1]
    emb_dim = 2 * half
    assert emb_dim % 2 == 0
    assert seq_len < (1 << 24), "positions generated in f32; exact only up to 2^24"
    # emb_dim % 128 == 0 keeps output stores lane-dense (unmasked vst); smaller
    # emb_dim still runs correctly (block last dim == full dim) just with masked stores.

    # Row 0: inv_freq_full[j] = inv_freq[j // 2];  Row 1: phase = [0, pi/2, 0, pi/2, ...]
    inv_full = jnp.repeat(inv_freq.reshape(1, -1).astype(jnp.float32), 2, axis=1)
    phase = jnp.tile(jnp.array([[0.0, math.pi / 2]], jnp.float32), (1, half))
    params = jnp.concatenate([inv_full, phase], axis=0)          # (2, emb_dim)

    budget, vmem_limit = _vmem_budget()
    emb_itemsize = None if emb is None else jnp.dtype(emb.dtype).itemsize
    ts = _choose_seq_tile(seq_len, emb_dim, emb_itemsize, budget)
    num_seq_tiles = pl.cdiv(seq_len, ts)

    out_dtype = jnp.dtype(out_dtype)
    out_shape = jax.ShapeDtypeStruct((bs, seq_len, emb_dim), out_dtype)
    params_spec = pl.BlockSpec((2, emb_dim), lambda s, b: (0, 0))
    # Squeezed batch dim: kernel sees (ts, emb_dim) refs (no in-kernel reshape).
    tile_spec = pl.BlockSpec((None, ts, emb_dim), lambda s, b: (b, s, 0))
    scratch_shapes = [pltpu.VMEM((ts, emb_dim), jnp.float32)]
    compiler_params = pltpu.CompilerParams(
        dimension_semantics=("parallel", "arbitrary"),
        vmem_limit_bytes=vmem_limit,
    )

    if emb is None:
        # No zeros tensor: dedicated kernel with no emb input -> half the HBM traffic.
        return pl.pallas_call(
            _pe_only_kernel,
            out_shape=out_shape,
            grid_spec=pltpu.PrefetchScalarGridSpec(
                num_scalar_prefetch=0,
                grid=(num_seq_tiles, bs),
                in_specs=[params_spec],
                out_specs=tile_spec,
                scratch_shapes=scratch_shapes,
            ),
            compiler_params=compiler_params,
        )(params)

    io_aliases = {}
    if donate_emb and jnp.dtype(emb.dtype) == out_dtype:
        io_aliases = {1: 0}   # inputs: params=0, emb=1 -> alias emb to output 0

    return pl.pallas_call(
        _pe_add_kernel,
        out_shape=out_shape,
        grid_spec=pltpu.PrefetchScalarGridSpec(
            num_scalar_prefetch=0,
            grid=(num_seq_tiles, bs),
            in_specs=[params_spec, tile_spec],
            out_specs=tile_spec,
            scratch_shapes=scratch_shapes,
        ),
        compiler_params=compiler_params,
        input_output_aliases=io_aliases,
    )(params, emb)


def make_inv_freq(emb_dim, k=10000):
    """Deterministic parameter construction matching __init__."""
    d = jnp.arange(0, emb_dim, 2, dtype=jnp.float32)
    return (1.0 / (k ** (d / emb_dim)))[None, :]                 # (1, emb_dim // 2)


def reference(x, inv_freq, emb=None):
    """Pure-JAX reference of the PyTorch forward."""
    bs, seq_len = x.shape
    theta = jnp.arange(seq_len, dtype=jnp.float32)[:, None] * inv_freq[0]   # (L, D/2)
    pe = jnp.stack([jnp.sin(theta), jnp.cos(theta)], axis=-1)               # (L, D/2, 2)
    pe = pe.reshape(seq_len, -1)                                            # 'l (d n)'
    pe = jnp.broadcast_to(pe[None], (bs, seq_len, pe.shape[-1]))
    return pe if emb is None else pe + emb


if __name__ == "__main__":
    key = jax.random.PRNGKey(0)
    bs, seq_len, emb_dim = 2, 8, 32

    k1, k2 = jax.random.split(key)
    x = jax.random.randint(k1, (bs, seq_len), 0, 100, dtype=jnp.int32)
    emb = jax.random.normal(k2, (bs, seq_len, emb_dim), dtype=jnp.float32)
    inv_freq = make_inv_freq(emb_dim)

    # 1) f32 embedding added
    out = jax.block_until_ready(position_embedding(x, inv_freq, emb))
    ref = reference(x, inv_freq, emb)
    assert out.shape == (bs, seq_len, emb_dim) and out.dtype == jnp.float32
    assert jnp.allclose(out, ref, atol=1e-5, rtol=1e-5), "mismatch with f32 emb"

    # 2) emb is None path (pure positional embedding, no emb DMA)
    out_pe = jax.block_until_ready(position_embedding(x, inv_freq, None))
    ref_pe = reference(x, inv_freq, None)
    assert jnp.allclose(out_pe, ref_pe, atol=1e-5, rtol=1e-5), "mismatch without emb"

    # 3) bf16 embedding path: native-dtype DMA, f32 cast happens in VMEM in-kernel
    emb_bf16 = emb.astype(jnp.bfloat16)
    out_bf = jax.block_until_ready(position_embedding(x, inv_freq, emb_bf16))
    ref_bf = reference(x, inv_freq, emb_bf16.astype(jnp.float32))
    assert jnp.allclose(out_bf, ref_bf, atol=1e-3, rtol=1e-3), "mismatch with bf16 emb"

    # 4) larger lane-dense case: multi-tile seq grid + pe caching across the batch axis
    seq_big, dim_big = 512, 128
    xb = jnp.zeros((bs, seq_big), jnp.int32)
    inv_big = make_inv_freq(dim_big)
    out_big = jax.block_until_ready(position_embedding(xb, inv_big, None))
    ref_big = reference(xb, inv_big, None)
    assert jnp.allclose(out_big, ref_big, atol=1e-3), "mismatch at seq_len=512"

    # 5) partial last seq tile (seq_len not a multiple of the chosen tile)
    xo = jnp.zeros((1, 24), jnp.int32)
    out_od = jax.block_until_ready(position_embedding(xo, inv_big, None))
    ref_od = reference(xo, inv_big, None)
    assert jnp.allclose(out_od, ref_od, atol=1e-4), "mismatch with partial seq tile"

    print("KERNEL_OK")
</pallas_src>

<mosaic_0001>
module attributes {stable_mosaic.version = 11 : i64} {
  func.func @_pe_add_kernel(%arg0: i32, %arg1: i32, %arg2: memref<2x32xf32, #tpu.memory_space<vmem>>, %arg3: memref<1x8x32xf32, #tpu.memory_space<vmem>>, %arg4: memref<1x8x32xf32, #tpu.memory_space<vmem>>, %arg5: memref<8x32xf32, #tpu.memory_space<vmem>>) attributes {dimension_semantics = [#tpu.dimension_semantics<parallel>, #tpu.dimension_semantics<arbitrary>], iteration_bounds = array<i64: 1, 2>, scalar_prefetch = 0 : i64, scratch_operands = 1 : i64, tpu.core_type = #tpu.core_type<tc>, window_params = [{pipeline_mode = #tpu.pipeline_mode<synchronous>, transform_indices = @transform_0, window_bounds = array<i64: 2, 32>}, {transform_indices = @transform_1, window_bounds = array<i64: 1, 8, 32>}, {transform_indices = @transform_2, window_bounds = array<i64: 1, 8, 32>}]} {
    %c8_i32 = arith.constant 8 : i32
    %0 = arith.muli %arg0, %c8_i32 : i32
    %1 = arith.sitofp %0 : i32 to f32
    %c0_i32 = arith.constant 0 : i32
    %2 = arith.cmpi eq, %arg1, %c0_i32 : i32
    %3 = arith.extui %2 : i1 to i32
    %c0_i32_0 = arith.constant 0 : i32
    %4 = arith.cmpi ne, %3, %c0_i32_0 : i32
    scf.if %4 {
      %c0_8 = arith.constant 0 : index
      %c0_9 = arith.constant 0 : index
      %12 = vector.load %arg2[%c0_8, %c0_9] : memref<2x32xf32, #tpu.memory_space<vmem>>, vector<1x32xf32>
      %13 = vector.broadcast %1 : f32 to vector<1x32xf32>
      %14 = arith.mulf %13, %12 : vector<1x32xf32>
      %c1 = arith.constant 1 : index
      %c0_10 = arith.constant 0 : index
      %15 = vector.load %arg2[%c1, %c0_10] : memref<2x32xf32, #tpu.memory_space<vmem>>, vector<1x32xf32>
      %16 = arith.addf %14, %15 : vector<1x32xf32>
      %17 = tpu.iota {dimensions = array<i32: 0>} : vector<8x32xi32>
      %18 = arith.sitofp %17 : vector<8x32xi32> to vector<8x32xf32>
      %19 = vector.broadcast %12 : vector<1x32xf32> to vector<8x32xf32>
      %20 = arith.mulf %18, %19 : vector<8x32xf32>
      %21 = vector.broadcast %16 : vector<1x32xf32> to vector<8x32xf32>
      %22 = arith.addf %20, %21 : vector<8x32xf32>
      %23 = math.sin %22 : vector<8x32xf32>
      %c0_11 = arith.constant 0 : index
      %c0_12 = arith.constant 0 : index
      %24 = vector.load %arg5[%c0_11, %c0_12] : memref<8x32xf32, #tpu.memory_space<vmem>>, vector<8x32xf32>
      tpu.vector_store %arg5[%c0_11, %c0_12], %23 {strides = array<i32>} : memref<8x32xf32, #tpu.memory_space<vmem>>, vector<8x32xf32>,
    } else {
    }
    %c0 = arith.constant 0 : index
    %c0_1 = arith.constant 0 : index
    %5 = vector.load %arg5[%c0, %c0_1] : memref<8x32xf32, #tpu.memory_space<vmem>>, vector<8x32xf32>
    %c0_2 = arith.constant 0 : index
    %c0_3 = arith.constant 0 : index
    %c0_4 = arith.constant 0 : index
    %6 = vector.load %arg3[%c0_2, %c0_3, %c0_4] : memref<1x8x32xf32, #tpu.memory_space<vmem>>, vector<1x8x32xf32>
    %7 = vector.shape_cast %6 : vector<1x8x32xf32> to vector<8x32xf32>
    %8 = arith.addf %5, %7 : vector<8x32xf32>
    %c0_5 = arith.constant 0 : index
    %c0_6 = arith.constant 0 : index
    %c0_7 = arith.constant 0 : index
    %9 = vector.load %arg4[%c0_5, %c0_6, %c0_7] : memref<1x8x32xf32, #tpu.memory_space<vmem>>, vector<1x8x32xf32>
    %10 = vector.shape_cast %9 : vector<1x8x32xf32> to vector<8x32xf32>
    %11 = vector.shape_cast %8 : vector<8x32xf32> to vector<1x8x32xf32>
    tpu.vector_store %arg4[%c0_5, %c0_6, %c0_7], %11 {strides = array<i32>} : memref<1x8x32xf32, #tpu.memory_space<vmem>>, vector<1x8x32xf32>,
    return
  }
  func.func @transform_0(%arg0: i32, %arg1: i32) -> (i32, i32) {
    %c0_i32 = arith.constant 0 : i32
    %c0_i32_0 = arith.constant 0 : i32
    %c0_i32_1 = arith.constant 0 : i32
    return %c0_i32, %c0_i32_0 : i32, i32
  }
  func.func @transform_1(%arg0: i32, %arg1: i32) -> (i32, i32, i32) {
    %c0_i32 = arith.constant 0 : i32
    %c0_i32_0 = arith.constant 0 : i32
    return %arg1, %arg0, %c0_i32 : i32, i32, i32
  }
  func.func @transform_2(%arg0: i32, %arg1: i32) -> (i32, i32, i32) {
    %c0_i32 = arith.constant 0 : i32
    %c0_i32_0 = arith.constant 0 : i32
    return %arg1, %arg0, %c0_i32 : i32, i32, i32
  }
}

</mosaic_0001>

<llo_original>
// kernel: tpu_custom_call.1
$region0: #{tpu_custom_call.1}
  #allocation0 [shape = 'u32[]', space=smem, size = 0x4, offset = 0x4, fixed_abs, tag = 'smem constant byte address 0x4 - core index']
  #allocation1 [shape = 'u32[144,128]{1,0:T(1,128)}', space=vmem, size = 0x12000, scoped, tag = 'internal scratch']
  #allocation2 [shape = 'f32[8,32]{1,0:T(8,128)}', space=vmem, size = 0x1000, scoped, tag = 'scratch operand']
  %s0 = inlined_call_operand.hbm [shape: f32[2,32], index: 0, kind: input, shape index: {}]
  %s1 = inlined_call_operand.hbm [shape: f32[2,8,32], index: 1, kind: input, shape index: {}]
  %s2 = inlined_call_operand.hbm [shape: f32[2,8,32], index: 2, kind: output, shape index: {}]
  %s3 = sld [smem:[#allocation0]]
  $region53: #{tpu_custom_call.1} parent=0
    _
  %s5 = ssub.s32 1, %s3
  %s6 = scalar_select 0, %s5, %s3
  $region1: #{tpu_custom_call.1} parent=0
    #allocation3 [shape = 'u8[1024]{0}', space=vmem, size = 0x400, scoped, tag = 'input window, operand 0, single buffered']
    #allocation4 [shape = 's32[2]{0}', space=sflag, size = 0x8, scoped, tag = 'scoped memory for tpu_custom_call.1']
    #allocation5 [shape = 's32[2]{0}', space=sflag, size = 0x8, scoped, tag = 'scoped memory for tpu_custom_call.1']
    #allocation6 [shape = 'u8[8192]{0}', space=vmem, size = 0x2000, scoped, tag = 'input window, operand 1']
    #allocation7 [shape = 's32[2]{0}', space=sflag, size = 0x8, scoped, tag = 'scoped memory for tpu_custom_call.1']
    #allocation8 [shape = 'u8[8192]{0}', space=vmem, size = 0x2000, scoped, tag = 'output window, operand 0']
    %7 = vsyncpa [#allocation4], 0
    %8 = vsyncpa [#allocation7], 0
    %s9 = scalar_lea.sflag [#allocation7], 1
    %10 = vsyncpa %s9, 0
    %11 = vsyncpa [#allocation5], 0
    %s12 = scalar_lea.sflag [#allocation5], 1
    %13 = vsyncpa %s12, 0
    loop: start=0, step=1, limit=4
    $region2: #{tpu_custom_call.1} parent=1 // loop_pre_header
      _
    $region3: #{tpu_custom_call.1} parent=1 // loop_header
      %s15 = sphi 0, %s19
      %p16 = scmp.ge.s32.totalorder %s15, 4
      %s22 = sphi 0, %s34
      %s23 = sphi 0, %s30
      %s24 = sphi 0, %s22
      %s25 = sphi 0, %s23
      %s26 = sphi 0, %s24
      %s27 = sphi 0, %s25
      %s35 = sphi 0, %s35
      %s37 = sphi 0, %s35
      %s38 = sphi 0, %s37
      %s52 = sphi 0, %s38
      %s60 = sphi 0, %s62
      %s63 = sphi 0, %s60
      %s64 = sphi 0, %s63
      %s80 = sphi 0, %s64
      %s88 = sphi 0, %s90
      %s91 = sphi 0, %s88
      %s92 = sphi 0, %s91
      %s108 = sphi 0, %s92
    $region4: #{tpu_custom_call.1} parent=1 // loop_header_branch
      %18 = sbr.rel (%p16) target = $region8
    $region5: #{tpu_custom_call.1} parent=1 // loop_body
      %s20 = ssub.s32 %s15, 1
      %s21 = ssub.s32 %s15, 2
      %s28 = sadd.s32 1, %s23
      %p29 = scmp.ge.s32.totalorder %s28, 2
      %s30 = scalar_select %p29, 0, %s28
      %s31 = sadd.s32 1, %s22
      %s32 = scalar_select %p29, %s31, %s22
      %p33 = scmp.ge.s32.totalorder %s32, 1
      %s34 = scalar_select %p33, 0, %s32
      %s36 = sadd.s32 %s35, 1
      %p39 = scmp.eq.s32.totalorder %s15, 1
      %p40 = scmp.ne.s32.totalorder %s35, %s37
      %p41 = scmp.eq.s32.totalorder %s15, 0
      %p42 = por %p40, %p41
      %p43 = scmp.ne.s32.totalorder %s35, %s37
      %p44 = scmp.eq.s32.totalorder %s20, 1
      %p45 = por %p43, %p44
      %p46 = scmp.ne.s32.totalorder %s37, %s38
      %p47 = scmp.eq.s32.totalorder %s20, 0
      %p48 = por %p46, %p47
      %p49 = scmp.ne.s32.totalorder %s37, %s38
      %p50 = scmp.eq.s32.totalorder %s21, 1
      %p51 = por %p49, %p50
      %p53 = scmp.ne.s32.totalorder %s38, %s52
      %p54 = scmp.eq.s32.totalorder %s21, 0
      %p55 = por %p53, %p54
      %s56 = ssub.s32 %s23, %s30
      %s57 = ssub.s32 %s22, %s34
      %s58 = sor.u32 %s56, %s57
      %p59 = scmp.eq.s32.totalorder %s58, 0
      %s61 = sadd.s32 %s60, 1
      %s62 = scalar_select %p59, %s60, %s61
      %p65 = pneg %p59
      %p66 = scmp.eq.s32.totalorder %s15, 1
      %p67 = por %p65, %p66
      %p68 = scmp.ne.s32.totalorder %s60, %s63
      %p69 = scmp.eq.s32.totalorder %s15, 0
      %p70 = por %p68, %p69
      %p71 = scmp.ne.s32.totalorder %s60, %s63
      %p72 = scmp.eq.s32.totalorder %s20, 1
      %p73 = por %p71, %p72
      %p74 = scmp.ne.s32.totalorder %s63, %s64
      %p75 = scmp.eq.s32.totalorder %s20, 0
      %p76 = por %p74, %p75
      %p77 = scmp.ne.s32.totalorder %s63, %s64
      %p78 = scmp.eq.s32.totalorder %s21, 1
      %p79 = por %p77, %p78
      %p81 = scmp.ne.s32.totalorder %s64, %s80
      %p82 = scmp.eq.s32.totalorder %s21, 0
      %p83 = por %p81, %p82
      %s84 = ssub.s32 %s23, %s30
      %s85 = ssub.s32 %s22, %s34
      %s86 = sor.u32 %s84, %s85
      %p87 = scmp.eq.s32.totalorder %s86, 0
      %s89 = sadd.s32 %s88, 1
      %s90 = scalar_select %p87, %s88, %s89
      %p93 = pneg %p87
      %p94 = scmp.eq.s32.totalorder %s15, 1
      %p95 = por %p93, %p94
      %p96 = scmp.ne.s32.totalorder %s88, %s91
      %p97 = scmp.eq.s32.totalorder %s15, 0
      %p98 = por %p96, %p97
      %p99 = scmp.ne.s32.totalorder %s88, %s91
      %p100 = scmp.eq.s32.totalorder %s20, 1
      %p101 = por %p99, %p100
      %p102 = scmp.ne.s32.totalorder %s91, %s92
      %p103 = scmp.eq.s32.totalorder %s20, 0
      %p104 = por %p102, %p103
      %p105 = scmp.ne.s32.totalorder %s91, %s92
      %p106 = scmp.eq.s32.totalorder %s21, 1
      %p107 = por %p105, %p106
      %p109 = scmp.ne.s32.totalorder %s92, %s108
      %p110 = scmp.eq.s32.totalorder %s21, 0
      %p111 = por %p109, %p110
      %p112 = scmp.le.s32.totalorder 1, %s15
      %p113 = scmp.lt.s32.totalorder %s15, 3
      %p114 = pnand %p112, %p113
      %p115 = pneg %p114
      // Predicated region
      $region9: #{tpu_custom_call.1} parent=5 // pred_check
        _
      $region10: #{tpu_custom_call.1} parent=5 // pred_check_branch
        %117 = sbr.rel (%p114) target = $region12
      $region11: #{tpu_custom_call.1} parent=5 // pred_region
        %s118 = ssub.s32 %s15, 1
        // Predicated region
        $region13: #{tpu_custom_call.1} parent=11 // pred_check
          %p119 = pneg %p48
        $region14: #{tpu_custom_call.1} parent=11 // pred_check_branch
          %121 = sbr.rel (%p119) target = $region16
        $region15: #{tpu_custom_call.1} parent=11 // pred_region
          %s123 = ssub.s32 32, 32
          %124 = vsyncadd [#allocation4], %s123
          %s126 = sshll.u32 [#allocation3], 4
          %s127 = int_to_ptr.vmem [resolvable:$true] %s126
          %129 = dma.hbm_to_vmem [thread:$0]  %s0, 32, %s127, [#allocation4]
        $region16: #{tpu_custom_call.1} parent=11 // pred_fallthru
          _
      $region12: #{tpu_custom_call.1} parent=5 // pred_fallthru
        _
      %p130 = scmp.lt.s32.totalorder %s15, 2
      // Predicated region
      $region17: #{tpu_custom_call.1} parent=5 // pred_check
        %p131 = pneg %p130
      $region18: #{tpu_custom_call.1} parent=5 // pred_check_branch
        %133 = sbr.rel (%p131) target = $region20
      $region19: #{tpu_custom_call.1} parent=5 // pred_region
        // Predicated region
        $region21: #{tpu_custom_call.1} parent=19 // pred_check
          %p134 = pneg %p70
        $region22: #{tpu_custom_call.1} parent=19 // pred_check_branch
          %136 = sbr.rel (%p134) target = $region24
        $region23: #{tpu_custom_call.1} parent=19 // pred_region
          %s137 = sand.u32 %s60, 1
          %s138 = scalar_lea.sflag [#allocation7], %s137
          %s139 = sand.u32 %s60, 1
          %s140 = smul.addr %s139, 8
          %s141 = scalar_lea.vmem [#allocation6], %s140
          %s143 = ssub.s32 128, 128
          %144 = vsyncadd %s138, %s143
          %s145 = sadd.s32 %s22, %s23
          %s146 = smul.addr %s145, 128
          %s147 = scalar_lea.hbm %s1, %s146
          %s149 = sshll.u32 %s141, 4
          %s150 = int_to_ptr.vmem [resolvable:$true] %s149
          %152 = dma.hbm_to_vmem [thread:$0]  %s147, 128, %s150, %s138
        $region24: #{tpu_custom_call.1} parent=19 // pred_fallthru
          _
      $region20: #{tpu_custom_call.1} parent=5 // pred_fallthru
        _
      %p153 = scmp.le.s32.totalorder 1, %s15
      %p154 = scmp.lt.s32.totalorder %s15, 3
      %p155 = pnand %p153, %p154
      %p156 = pneg %p155
      // Predicated region
      $region25: #{tpu_custom_call.1} parent=5 // pred_check
        _
      $region26: #{tpu_custom_call.1} parent=5 // pred_check_branch
        %158 = sbr.rel (%p155) target = $region28
      $region27: #{tpu_custom_call.1} parent=5 // pred_region
        %s159 = ssub.s32 %s15, 1
        // Predicated region
        $region29: #{tpu_custom_call.1} parent=27 // pred_check
          %p160 = pneg %p48
        $region30: #{tpu_custom_call.1} parent=27 // pred_check_branch
          %162 = sbr.rel (%p160) target = $region32
        $region31: #{tpu_custom_call.1} parent=27 // pred_region
          %163 = dma.done [#allocation4], 32
        $region32: #{tpu_custom_call.1} parent=27 // pred_fallthru
          _
        %s164 = sand.u32 %s63, 1
        %s165 = scalar_lea.sflag [#allocation7], %s164
        %s166 = sand.u32 %s63, 1
        %s167 = smul.addr %s166, 8
        %s168 = scalar_lea.vmem [#allocation6], %s167
        // Predicated region
        $region33: #{tpu_custom_call.1} parent=27 // pred_check
          %p169 = pneg %p76
        $region34: #{tpu_custom_call.1} parent=27 // pred_check_branch
          %171 = sbr.rel (%p169) target = $region36
        $region35: #{tpu_custom_call.1} parent=27 // pred_region
          %172 = dma.done %s165, 128
        $region36: #{tpu_custom_call.1} parent=27 // pred_fallthru
          _
        %p173 = pneg %p48
        %p174 = pneg %p45
        %s175 = sand.u32 %s63, 1
        %s176 = scalar_lea.sflag [#allocation7], %s175
        %s177 = sand.u32 %s63, 1
        %s178 = smul.addr %s177, 8
        %s179 = scalar_lea.vmem [#allocation6], %s178
        %p180 = pneg %p76
        %p181 = pneg %p73
        %p182 = pneg %p104
        %p183 = pneg %p101
        %s184 = sand.u32 %s91, 1
        %s185 = scalar_lea.sflag [#allocation5], %s184
        %s186 = sand.u32 %s91, 1
        %s187 = smul.addr %s186, 8
        %s188 = scalar_lea.vmem [#allocation8], %s187
        %s189 = smul.u32 %s24, 8
        %s190 = scvt.s32.f32 %s189
        %p191 = scmp.eq.s32.totalorder %s25, 0
        // Predicated region
        $region37: #{tpu_custom_call.1} parent=27 // pred_check
          %p192 = pneg %p191
        $region38: #{tpu_custom_call.1} parent=27 // pred_check_branch
          %194 = sbr.rel (%p192) target = $region40
        $region39: #{tpu_custom_call.1} parent=27 // pred_region
          %v195 = vld [vmem:[#allocation3] sm:$0x1]
          %v196 = vstv %s190
          %v197 = vmul.f32 %v196, %v195
          %v198 = vld [vmem:[#allocation3 + $0x1] sm:$0x1]
          %v199 = vadd.f32 %v197, %v198
          %v200 = vlaneseq
          %v201 = vshrl.u32 %v200, 7
          %v202 = vcvt.s32.f32 %v201
          %v203 = vlaneseq
          %v204 = vshrl.u32 %v203, 7
          %v205 = vsub.s32 0, %v204
          %v206 = vrot.slane %v195, %v205
          %v207 = vmul.f32 %v202, %v206
          %v208 = vlaneseq
          %v209 = vshrl.u32 %v208, 7
          %v210 = vsub.s32 0, %v209
          %v211 = vrot.slane %v199, %v210
          %v212 = vadd.f32 %v207, %v211
          %v213 = vand.u32 2147483647, %v212
          %vm214 = vcmp.le.f32.partialorder %v213, 0.7853982
          %vm215 = vcmp.lt.s32.totalorder %v212, 0
          %v216 = vand.u32 %v212, 2139095040
          %v217 = vshrl.u32 %v216, 23
          %v218 = vsub.s32 %v217, 127
          %v219 = vand.u32 2147483647, %v212
          %v220 = vand.u32 %v219, 8388607
          %v221 = vor.u32 %v220, 8388608
          %v222 = vsub.s32 0, %v221
          %v223 = vadd.s32 %v218, 1
          %vm224 = vcmp.gt.s32.totalorder %v223, 0
          %v225 = vsel %vm224, %v223, 0
          %v226 = vshrl.u32 %v225, 5
          %v227 = vand.u32 %v225, 31
          %v228 = vsub.s32 32, %v227
          %v229 = vshrl.u32 683565275, %v228
          %v230 = vshll.u32 683565275, %v227
          %v231 = vshrl.u32 2475754826, %v228
          %v232 = vor.u32 %v230, %v231
          %v233 = vshll.u32 2475754826, %v227
          %v234 = vshrl.u32 2131351028, %v228
          %v235 = vor.u32 %v233, %v234
          %v236 = vshll.u32 2131351028, %v227
          %v237 = vshrl.u32 2102212464, %v228
          %v238 = vor.u32 %v236, %v237
          %v239 = vshll.u32 2102212464, %v227
          %v240 = vshrl.u32 920167782, %v228
          %v241 = vor.u32 %v239, %v240
          %v242 = vshll.u32 920167782, %v227
          %v243 = vshrl.u32 1326507024, %v228
          %v244 = vor.u32 %v242, %v243
          %vm245 = vcmp.lt.s32.totalorder %v226, 1
          %vm246 = vcmp.lt.s32.totalorder %v226, 2
          %vm247 = vcmp.lt.s32.totalorder %v226, 3
          %vm248 = vcmp.lt.s32.totalorder %v226, 4
          %v249 = vsel %vm245, %v229, %v232
          %v250 = vsel %vm248, %v238, 2102212464
          %v251 = vsel %vm247, %v235, %v250
          %v252 = vsel %vm246, %v249, %v251
          %v253 = vsel %vm245, %v232, %v235
          %v254 = vsel %vm248, %v241, 920167782
          %v255 = vsel %vm247, %v238, %v254
          %v256 = vsel %vm246, %v253, %v255
          %v257 = vsel %vm245, %v235, %v238
          %v258 = vsel %vm248, %v244, 1326507024
          %v259 = vsel %vm247, %v241, %v258
          %v260 = vsel %vm246, %v257, %v259
          %v261 = vshll.u32 %v221, 8
          %v262 = vmul.u32.u64.compose %v261, %v260
          %v263 = vextract.low.u32 %v262
          %v264 = vextract.high.u32 %v262
          %v265 = vmul.u32.u64.compose %v261, %v256
          %v266 = vextract.low.u32 %v265
          %v267 = vextract.high.u32 %v265
          %v268 = vmul.u32 %v261, %v252
          %v269 = vadd.s32 %v264, %v266
          %vm270 = vc.u32 %v264, %v266
          %v271 = vadd.s32 %v267, 1
          %v272 = vsel %vm270, %v271, %v267
          %v273 = vadd.s32 %v268, %v272
          %v274 = vadd.s32 %v273, 536870912
          %v275 = vshrl.u32 %v274, 30
          %v276 = vshll.u32 %v275, 30
          %v277 = vsub.s32 %v273, %v276
          %vm278 = vcmp.lt.s32.totalorder %v277, 0
          %v279 = vsub.s32 0, %v277
          %v280 = vsel %vm278, %v279, %v277
          %v281 = vclz %v280
          %v282 = vsub.s32 %v281, 2
          %vm283 = vcmp.gt.s32.totalorder 0, %v282
          %v284 = vsel %vm283, 0, %v282
          %v285 = vsub.s32 32, %v284
          %v286 = vshll.u32 %v277, %v284
          %v287 = vshrl.u32 %v269, %v285
          %v288 = vor.u32 %v286, %v287
          %v289 = vsub.s32 4294967266, %v284
          %v290 = vadd.s32 %v289, 127
          %v291 = vshll.u32 %v290, 23
          %v292 = vor.u32 4788187, %v291
          %v293 = vand.u32 2147483647, %v292
          %v295 = vcvt.s32.f32 %v288
          %v296 = vmul.f32 %v295, %v293
          %v297 = vxor.u32 %v296, 2147483648
          %v298 = vsel %vm215, %v297, %v296
          %v299 = vsub.s32 4, %v275
          %v300 = vsel %vm215, %v299, %v275
          %v301 = vsel %vm214, %v212, %v298
          %v302 = vsel %vm214, 0, %v300
          %v303 = vcosq.f32.pop %v301
          %v304 = vsinq.f32.pop %v301
          %vm305 = vweird.f32 %v212
          %v306 = vadd.s32 %v302, 3
          %v307 = vand.u32 %v306, 3
          %vm308 = vcmp.lt.s32.totalorder %v307, 2
          %vm309 = vcmp.eq.s32.totalorder %v307, 0
          %v310 = vxor.u32 %v304, 2147483648
          %v311 = vsel %vm309, %v303, %v310
          %vm312 = vcmp.eq.s32.totalorder %v307, 2
          %v313 = vxor.u32 %v303, 2147483648
          %v314 = vsel %vm312, %v313, %v304
          %v315 = vsel %vm308, %v311, %v314
          %v316 = vsel %vm305, nan, %v315
          %vm317 = vcmask 261120
          %318 = vst.msk [vmem:[#allocation2] sm:$0xff] %vm317, %v316
        $region40: #{tpu_custom_call.1} parent=27 // pred_fallthru
          _
        %v319 = vld [vmem:[#allocation2] sm:$0xff]
        %v320 = vld [vmem:[%s168] sm:$0xff]
        %v321 = vadd.f32 %v319, %v320
        %vm322 = vcmask 261120
        %323 = vst.msk [vmem:[%s188] sm:$0xff] %vm322, %v321
        %s324 = sand.u32 %s91, 1
        %s325 = scalar_lea.sflag [#allocation5], %s324
        %s326 = sand.u32 %s91, 1
        %s327 = smul.addr %s326, 8
        %s328 = scalar_lea.vmem [#allocation8], %s327
        // Predicated region
        $region41: #{tpu_custom_call.1} parent=27 // pred_check
          %p329 = pneg %p101
        $region42: #{tpu_custom_call.1} parent=27 // pred_check_branch
          %331 = sbr.rel (%p329) target = $region44
        $region43: #{tpu_custom_call.1} parent=27 // pred_region
          %s333 = ssub.s32 128, 128
          %334 = vsyncadd %s325, %s333
          %s335 = sadd.s32 %s24, %s25
          %s336 = smul.addr %s335, 128
          %s337 = scalar_lea.hbm %s2, %s336
          %s339 = sshll.u32 %s328, 4
          %s340 = int_to_ptr.vmem [resolvable:$true] %s339
          %342 = dma.vmem_to_hbm [thread:$0]  %s340, 128, %s337, %s325
        $region44: #{tpu_custom_call.1} parent=27 // pred_fallthru
          _
      $region28: #{tpu_custom_call.1} parent=5 // pred_fallthru
        _
      %p343 = scmp.le.s32.totalorder 2, %s15
      // Predicated region
      $region45: #{tpu_custom_call.1} parent=5 // pred_check
        %p344 = pneg %p343
      $region46: #{tpu_custom_call.1} parent=5 // pred_check_branch
        %346 = sbr.rel (%p344) target = $region48
      $region47: #{tpu_custom_call.1} parent=5 // pred_region
        %s347 = ssub.s32 %s15, 2
        // Predicated region
        $region49: #{tpu_custom_call.1} parent=47 // pred_check
          %p348 = pneg %p107
        $region50: #{tpu_custom_call.1} parent=47 // pred_check_branch
          %350 = sbr.rel (%p348) target = $region52
        $region51: #{tpu_custom_call.1} parent=47 // pred_region
          %s351 = sand.u32 %s92, 1
          %s352 = scalar_lea.sflag [#allocation5], %s351
          %s353 = sand.u32 %s92, 1
          %s354 = smul.addr %s353, 8
          %s355 = scalar_lea.vmem [#allocation8], %s354
          %356 = dma.done %s352, 128
        $region52: #{tpu_custom_call.1} parent=47 // pred_fallthru
          _
      $region48: #{tpu_custom_call.1} parent=5 // pred_fallthru
        _
    $region6: #{tpu_custom_call.1} parent=1 // loop_footer
      %s19 = sadd.s32 1, %s15
    $region7: #{tpu_custom_call.1} parent=1 // loop_footer_branch
      %14 = sbr.rel target = $region3
    $region8: #{tpu_custom_call.1} parent=1 // loop_exit
      _
    %357 = vsyncpa [#allocation4], 1
    %s358 = scalar_lea.sflag [#allocation4], 1
    %359 = vsyncpa %s358, 1
    %360 = vsyncpa [#allocation7], 1
    %s361 = scalar_lea.sflag [#allocation7], 1
    %362 = vsyncpa %s361, 1
    %363 = vsyncpa [#allocation5], 1
    %s364 = scalar_lea.sflag [#allocation5], 1
    %365 = vsyncpa %s364, 1

</llo_original>
